<compile_context>
chip_gen: v7x
topology: tpu7x:2x2x1
jax: 0.10.0
libtpu: 0.0.40
codegen_flags: <defaults>
</compile_context>

<pallas_src>
import functools

import jax
import jax.numpy as jnp
from jax.experimental import pallas as pl
from jax.experimental.pallas import tpu as pltpu

VMEM = pl.BlockSpec(memory_space=pltpu.MemorySpace.VMEM)


def _round_up(x, m):
    return (x + m - 1) // m * m


def _vmem_limit():
    # Raise the scoped-VMEM limit where the chip has headroom (v6e: 128 MiB
    # physical vs 32 MiB default); stay under v7x's 64 MiB physical budget.
    try:
        cap = pltpu.get_tpu_info().vmem_capacity_bytes
        return min(int(cap * 3 // 4), 96 * 1024 * 1024)
    except Exception:
        return None  # fall back to the compiler default


# ----------------------------- kernel helpers -------------------------------
def _layernorm(x, g, b, eps=1e-5):
    mu = jnp.mean(x, axis=-1, keepdims=True)
    var = jnp.mean((x - mu) ** 2, axis=-1, keepdims=True)
    return (x - mu) * jax.lax.rsqrt(var + eps) * g + b


def _l2norm(x, eps=1e-12):
    ssq = jnp.sum(x * x, axis=-1, keepdims=True)
    return x * jax.lax.rsqrt(jnp.maximum(ssq, eps * eps))


def _bf16(x):
    return x.astype(jnp.bfloat16)


# -------------------------------- kernels -----------------------------------
def patch_embed_kernel(p_ref, w_ref, o_ref):
    # [tm, Kp](f32->bf16) @ [Kp, D](bf16) -> [tm, D](f32)
    o_ref[...] = jnp.dot(_bf16(p_ref[...]), w_ref[...],
                         preferred_element_type=jnp.float32)


def transformer_kernel(x_ref, lnpre_g, lnpre_b,
                       ln1g, ln1b, wqkv, bqkv, wo, bo,
                       ln2g, ln2b, w1, b1, w2, b2,
                       out_ref, *, num_heads):
    """One grid step == one pre-LN CLIP residual block.

    Grid axis 0 iterates over layers ("arbitrary").  The activation lives in
    the resident output block; layer weights (stacked on the leading axis) are
    double-buffered by the BlockSpec pipeline, so layer l+1's weights stream
    in while layer l computes.
    """
    B, S, D = out_ref.shape
    hd = D // num_heads
    scale = 1.0 / (hd ** 0.5)

    # Fused ln_pre at the first layer (activation already has cls+pos added).
    @pl.when(pl.program_id(0) == 0)
    def _():
        out_ref[...] = _layernorm(x_ref[...], lnpre_g[...], lnpre_b[...])

    x = out_ref[...]

    # ---- multi-head self attention (pre-LN), fused QKV projection ----
    y = _layernorm(x, ln1g[...], ln1b[...])
    qkv = jnp.dot(_bf16(y.reshape(B * S, D)), wqkv[...],
                  preferred_element_type=jnp.float32) + bqkv[...]
    qkv = qkv.reshape(B, S, 3 * D)
    q, k, v = qkv[:, :, :D], qkv[:, :, D:2 * D], qkv[:, :, 2 * D:]

    # Per-head SxS score/attend (static lane slices); head outputs are
    # concatenated and fed through ONE full-width out-projection below.
    head_outs = []
    for h in range(num_heads):
        sl = slice(h * hd, (h + 1) * hd)
        s = jnp.einsum('bqd,bkd->bqk', _bf16(q[:, :, sl]), _bf16(k[:, :, sl]),
                       preferred_element_type=jnp.float32) * scale
        s = s - jnp.max(s, axis=-1, keepdims=True)
        p = jnp.exp(s)
        p = p * pl.reciprocal(jnp.sum(p, axis=-1, keepdims=True), approx=True)
        head_outs.append(
            jnp.einsum('bqk,bkd->bqd', _bf16(p), _bf16(v[:, :, sl]),
                       preferred_element_type=jnp.float32))
    o = jnp.concatenate(head_outs, axis=-1).reshape(B * S, D)
    attn = jnp.dot(_bf16(o), wo[...],
                   preferred_element_type=jnp.float32) + bo[...]
    x = x + attn.reshape(B, S, D)

    # ---- MLP (pre-LN, QuickGELU as in CLIP) ----
    y = _layernorm(x, ln2g[...], ln2b[...])
    h1 = jnp.dot(_bf16(y.reshape(B * S, D)), w1[...],
                 preferred_element_type=jnp.float32) + b1[...]
    h1 = h1 * jax.nn.sigmoid(1.702 * h1)                 # f32 elementwise
    m = jnp.dot(_bf16(h1), w2[...],
                preferred_element_type=jnp.float32) + b2[...]
    out_ref[...] = x + m.reshape(B, S, D)


def head_kernel(x_ref, lng, lnb, proj_ref, label_ref,
                score_ref, pred_ref, dist_ref, *, topk, alpha, norm_pred):
    x = _layernorm(x_ref[...], lng[...], lnb[...])        # ln_post
    B, S, D = x.shape
    proj = proj_ref[...]                                  # bf16 [D, Fd]
    Fd = proj.shape[-1]

    # One fused projection for CLS + patch tokens, slice afterwards.
    feat = jnp.dot(_bf16(x.reshape(B * S, D)), proj,
                   preferred_element_type=jnp.float32).reshape(B, S, Fd)
    dist = _l2norm(feat[:, 0, :])                         # [B, Fd]
    pred = _l2norm(feat[:, 1:, :])                        # [B, N, Fd]
    label = _l2norm(label_ref[...])                       # [C, Fd]

    # score1: top-k (over patches) mean of patch/label similarities.
    sim = jnp.einsum('bnf,cf->bnc', pred, label,
                     preferred_element_type=jnp.float32)  # [B, N, C]
    t = sim
    acc = jnp.zeros((B, 1, sim.shape[-1]), jnp.float32)
    for _ in range(topk):
        m = jnp.max(t, axis=1, keepdims=True)
        acc = acc + m
        # NOTE: exact-duplicate values collapse (torch.topk keeps duplicates);
        # fine for continuous float inputs.
        t = jnp.where(t >= m, -jnp.inf, t)
    score1 = acc[:, 0, :] * (1.0 / float(topk))           # [B, C]

    # score2: CLS similarity.
    score2 = jnp.einsum('bf,cf->bc', dist, label,
                        preferred_element_type=jnp.float32)

    if norm_pred:
        score1 = _l2norm(score1)
        score2 = _l2norm(score2)

    score_ref[...] = alpha * score1 + (1.0 - alpha) * score2
    pred_ref[...] = pred
    dist_ref[...] = dist


# ------------------------------ pallas wrappers ------------------------------
def patch_embed(patches2d, wp):
    M, K = patches2d.shape
    D = wp.shape[1]
    Kp = _round_up(K, 128)                    # lane-align the contraction dim
    tm = 256 if M >= 256 else _round_up(M, 8)
    Mp = _round_up(M, tm)
    if Mp != M or Kp != K:
        patches2d = jnp.pad(patches2d, ((0, Mp - M), (0, Kp - K)))
    if Kp != K:
        wp = jnp.pad(wp, ((0, Kp - K), (0, 0)))
    out = pl.pallas_call(
        patch_embed_kernel,
        grid=(Mp // tm,),
        in_specs=[pl.BlockSpec((tm, Kp), lambda i: (i, 0)),
                  pl.BlockSpec((Kp, D), lambda i: (0, 0))],
        out_specs=pl.BlockSpec((tm, D), lambda i: (i, 0)),
        out_shape=jax.ShapeDtypeStruct((Mp, D), jnp.float32),
        compiler_params=pltpu.CompilerParams(
            dimension_semantics=("parallel",)),
    )(patches2d, wp)
    return out[:M]


def transformer(x, params, *, num_heads):
    B, S, D = x.shape
    L = params['wqkv'].shape[0]
    MLP = params['w1'].shape[-1]

    def full(shape):          # layer-independent, whole array each grid step
        return pl.BlockSpec(shape, lambda l: (0,) * len(shape))

    def per_layer(shape):     # stacked (L, ...) weights; squeeze the layer dim
        return pl.BlockSpec((None,) + shape, lambda l: (l,) + (0,) * len(shape))

    in_specs = [
        full((B, S, D)),                                   # x (post cls+pos)
        full((1, D)), full((1, D)),                        # ln_pre g/b
        per_layer((1, D)), per_layer((1, D)),              # ln1 g/b
        per_layer((D, 3 * D)), per_layer((1, 3 * D)),      # wqkv / bqkv
        per_layer((D, D)), per_layer((1, D)),              # wo / bo
        per_layer((1, D)), per_layer((1, D)),              # ln2 g/b
        per_layer((D, MLP)), per_layer((1, MLP)),          # w1 / b1
        per_layer((MLP, D)), per_layer((1, D)),            # w2 / b2
    ]
    return pl.pallas_call(
        functools.partial(transformer_kernel, num_heads=num_heads),
        grid=(L,),
        in_specs=in_specs,
        out_specs=pl.BlockSpec((B, S, D), lambda l: (0, 0, 0)),  # resident acc
        out_shape=jax.ShapeDtypeStruct((B, S, D), jnp.float32),
        compiler_params=pltpu.CompilerParams(
            dimension_semantics=("arbitrary",),
            vmem_limit_bytes=_vmem_limit()),
    )(x, params['ln_pre_g'], params['ln_pre_b'],
      params['ln1_g'], params['ln1_b'], params['wqkv'], params['bqkv'],
      params['wo'], params['bo'], params['ln2_g'], params['ln2_b'],
      params['w1'], params['b1'], params['w2'], params['b2'])


def head(xseq, params, label_embed, *, topk, alpha, norm_pred):
    B, S, _ = xseq.shape
    Fd = params['proj'].shape[1]
    C = label_embed.shape[0]
    return pl.pallas_call(
        functools.partial(head_kernel, topk=topk, alpha=alpha,
                          norm_pred=norm_pred),
        out_shape=(jax.ShapeDtypeStruct((B, C), jnp.float32),
                   jax.ShapeDtypeStruct((B, S - 1, Fd), jnp.float32),
                   jax.ShapeDtypeStruct((B, Fd), jnp.float32)),
        in_specs=[VMEM] * 5,
        out_specs=(VMEM, VMEM, VMEM),
    )(xseq, params['ln_post_g'], params['ln_post_b'], params['proj'],
      label_embed)


# ------------------------------ parameters -----------------------------------
def init_params(key, *, D, P, S, L, MLP, Fd, vocab):
    ks = jax.random.split(key, 12)

    def nrm(k, shape, scale=0.02, dtype=jnp.float32):
        return (scale * jax.random.normal(k, shape, jnp.float32)).astype(dtype)

    bf = jnp.bfloat16
    return {
        # patch embedding / embeddings / projections
        'wp': nrm(ks[0], (P, D), dtype=bf),
        'cls': nrm(ks[1], (1, D)),
        'pos': nrm(ks[2], (S, D)),
        'ln_pre_g': jnp.ones((1, D), jnp.float32),
        'ln_pre_b': jnp.zeros((1, D), jnp.float32),
        'ln_post_g': jnp.ones((1, D), jnp.float32),
        'ln_post_b': jnp.zeros((1, D), jnp.float32),
        'proj': nrm(ks[3], (D, Fd), dtype=bf),
        'text_table': jax.random.normal(ks[4], (vocab, Fd), jnp.float32),
        # transformer weights stacked on a leading layer axis (bf16 matmul
        # weights, f32 biases / LN params)
        'ln1_g': jnp.ones((L, 1, D), jnp.float32),
        'ln1_b': jnp.zeros((L, 1, D), jnp.float32),
        'wqkv': nrm(ks[5], (L, D, 3 * D), dtype=bf),
        'bqkv': jnp.zeros((L, 1, 3 * D), jnp.float32),
        'wo': nrm(ks[6], (L, D, D), dtype=bf),
        'bo': jnp.zeros((L, 1, D), jnp.float32),
        'ln2_g': jnp.ones((L, 1, D), jnp.float32),
        'ln2_b': jnp.zeros((L, 1, D), jnp.float32),
        'w1': nrm(ks[7], (L, D, MLP), dtype=bf),
        'b1': jnp.zeros((L, 1, MLP), jnp.float32),
        'w2': nrm(ks[8], (L, MLP, D), dtype=bf),
        'b2': jnp.zeros((L, 1, D), jnp.float32),
    }


# ------------------------------- forward -------------------------------------
def uafer_forward(params, x_nchw, label_token, *, patch, num_heads,
                  topk, alpha, norm_pred=True):
    B, Cc, Hh, Ww = x_nchw.shape
    gh, gw = Hh // patch, Ww // patch
    N = gh * gw

    # Conv2d(k=p, stride=p, bias=False) == patch extraction (glue) + matmul.
    patches = x_nchw.reshape(B, Cc, gh, patch, gw, patch)
    patches = patches.transpose(0, 2, 4, 1, 3, 5).reshape(B * N,
                                                          Cc * patch * patch)
    pe = patch_embed(patches, params['wp']).reshape(B, N, -1)
    D = pe.shape[-1]

    # class token + positional embedding (glue); ln_pre is fused into the
    # first grid step of the transformer kernel.
    cls = jnp.broadcast_to(params['cls'].reshape(1, 1, D), (B, 1, D))
    xseq = jnp.concatenate([cls, pe], axis=1) + params['pos'][None]

    # transformer: ONE pallas_call, grid over layers, activation resident.
    xseq = transformer(xseq, params, num_heads=num_heads)

    # TODO(synk): the frozen CLIP text transformer (forward_text / encode_text)
    # is replaced by a deterministic embedding-table lookup producing the
    # [num_classes, final_dim] label embeddings.
    label_embed = params['text_table'][label_token]

    # ln_post + fused projection + L2 norms + top-k score fusion.
    return head(xseq, params, label_embed, topk=topk, alpha=alpha,
                norm_pred=norm_pred)


# --------------------------------- main ---------------------------------------
if __name__ == "__main__":
    key = jax.random.PRNGKey(0)
    kx, kp = jax.random.split(key)

    B, Cc, HW, patch = 2, 3, 16, 8
    D, L, Hn, MLP, Fd = 32, 2, 4, 128, 16
    num_classes, topk, alpha, vocab = 5, 2, 0.5, 16
    S = (HW // patch) ** 2 + 1
    P = Cc * patch * patch

    x = jax.random.normal(kx, (B, Cc, HW, HW), jnp.float32)
    label_token = (jnp.arange(num_classes, dtype=jnp.int32) % vocab)
    params = init_params(kp, D=D, P=P, S=S, L=L, MLP=MLP, Fd=Fd, vocab=vocab)

    score, pred_feat, dist_feat = uafer_forward(
        params, x, label_token, patch=patch, num_heads=Hn,
        topk=topk, alpha=alpha, norm_pred=True)
    jax.block_until_ready((score, pred_feat, dist_feat))

    assert score.shape == (B, num_classes)
    assert pred_feat.shape == (B, S - 1, Fd)
    assert dist_feat.shape == (B, Fd)
    print("KERNEL_OK")
</pallas_src>

<mosaic_0001>
module attributes {stable_mosaic.version = 11 : i64} {
  func.func @patch_embed_kernel(%arg0: i32, %arg1: memref<8x256xf32, #tpu.memory_space<vmem>>, %arg2: memref<256x32xbf16, #tpu.memory_space<vmem>>, %arg3: memref<8x32xf32, #tpu.memory_space<vmem>>) attributes {dimension_semantics = [#tpu.dimension_semantics<parallel>], iteration_bounds = array<i64: 1>, scalar_prefetch = 0 : i64, scratch_operands = 0 : i64, tpu.core_type = #tpu.core_type<tc>, window_params = [{transform_indices = @transform_0, window_bounds = array<i64: 8, 256>}, {pipeline_mode = #tpu.pipeline_mode<synchronous>, transform_indices = @transform_1, window_bounds = array<i64: 256, 32>}, {transform_indices = @transform_2, window_bounds = array<i64: 8, 32>}]} {
    %c0 = arith.constant 0 : index
    %c0_0 = arith.constant 0 : index
    %0 = vector.load %arg1[%c0, %c0_0] : memref<8x256xf32, #tpu.memory_space<vmem>>, vector<8x256xf32>
    %1 = arith.truncf %0 : vector<8x256xf32> to vector<8x256xbf16>
    %c0_1 = arith.constant 0 : index
    %c0_2 = arith.constant 0 : index
    %2 = vector.load %arg2[%c0_1, %c0_2] : memref<256x32xbf16, #tpu.memory_space<vmem>>, vector<256x32xbf16>
    %cst = arith.constant dense<0.000000e+00> : vector<8x32xf32>
    %3 = tpu.matmul %1, %2, %cst {dimension_numbers = #tpu.dot_dimension_numbers<[1], [0], [0], [1], [0, 0, 1, 1], [], []>} : vector<8x256xbf16>, vector<256x32xbf16>, vector<8x32xf32> -> vector<8x32xf32>
    %c0_3 = arith.constant 0 : index
    %c0_4 = arith.constant 0 : index
    %4 = vector.load %arg3[%c0_3, %c0_4] : memref<8x32xf32, #tpu.memory_space<vmem>>, vector<8x32xf32>
    tpu.vector_store %arg3[%c0_3, %c0_4], %3 {strides = array<i32>} : memref<8x32xf32, #tpu.memory_space<vmem>>, vector<8x32xf32>,
    return
  }
  func.func @transform_0(%arg0: i32) -> (i32, i32) {
    %c0_i32 = arith.constant 0 : i32
    %c0_i32_0 = arith.constant 0 : i32
    return %arg0, %c0_i32 : i32, i32
  }
  func.func @transform_1(%arg0: i32) -> (i32, i32) {
    %c0_i32 = arith.constant 0 : i32
    %c0_i32_0 = arith.constant 0 : i32
    %c0_i32_1 = arith.constant 0 : i32
    return %c0_i32, %c0_i32_0 : i32, i32
  }
  func.func @transform_2(%arg0: i32) -> (i32, i32) {
    %c0_i32 = arith.constant 0 : i32
    %c0_i32_0 = arith.constant 0 : i32
    return %arg0, %c0_i32 : i32, i32
  }
}

</mosaic_0001>

<llo_original>
// kernel: tpu_custom_call.1
$region0: #{tpu_custom_call.1}
  #allocation0 [shape = 'u32[]', space=smem, size = 0x4, offset = 0x4, fixed_abs, tag = 'smem constant byte address 0x4 - core index']
  #allocation1 [shape = 'u32[144,128]{1,0:T(1,128)}', space=vmem, size = 0x12000, scoped, tag = 'internal scratch']
  %s0 = inlined_call_operand.vmem [shape: f32[8,256], index: 0, kind: input, shape index: {}]
  %s1 = inlined_call_operand.vmem [shape: bf16[256,32], index: 1, kind: input, shape index: {}]
  %s2 = inlined_call_operand.hbm [shape: f32[8,32], index: 2, kind: output, shape index: {}]
  %s3 = sld [smem:[#allocation0]]
  $region18: #{tpu_custom_call.1} parent=0
    _
  %s5 = ssub.s32 1, %s3
  %s6 = scalar_select 0, %s5, %s3
  $region1: #{tpu_custom_call.1} parent=0
    #allocation2 [shape = 'u8[4096]{0}', space=vmem, size = 0x1000, scoped, tag = 'output window, operand 0, single buffered']
    #allocation3 [shape = 's32[1]{0}', space=sflag, size = 0x4, scoped, tag = 'scoped memory for tpu_custom_call.1']
    %7 = vsyncpa [#allocation3], 0
    // Predicated region
    $region2: #{tpu_custom_call.1} parent=1 // pred_check
      _
    $region3: #{tpu_custom_call.1} parent=1 // pred_check_branch
      %9 = sbr.rel (0) target = $region5
    $region4: #{tpu_custom_call.1} parent=1 // pred_region
      _
    $region5: #{tpu_custom_call.1} parent=1 // pred_fallthru
      _
    // Predicated region
    $region6: #{tpu_custom_call.1} parent=1 // pred_check
      _
    $region7: #{tpu_custom_call.1} parent=1 // pred_check_branch
      %11 = sbr.rel (0) target = $region9
    $region8: #{tpu_custom_call.1} parent=1 // pred_region
      _
    $region9: #{tpu_custom_call.1} parent=1 // pred_fallthru
      _
    %v13 = vld [vmem:[%s0] sm:$0xff]
    %v14 = vld [vmem:[%s0 + $0x8] sm:$0xff]
    %v15 = vpack.c.bf16 %v13, %v13
    %v16 = vpack.c.bf16 %v14, %v14
    %v17 = vld [vmem:[%s1] sm:$0xf]
    %v18 = vld [vmem:[%s1 + $0x4] sm:$0xf]
    %v19 = vld [vmem:[%s1 + $0x8] sm:$0xf]
    %v20 = vld [vmem:[%s1 + $0xc] sm:$0xf]
    %v21 = vld [vmem:[%s1 + $0x10] sm:$0xf]
    %v22 = vld [vmem:[%s1 + $0x14] sm:$0xf]
    %v23 = vld [vmem:[%s1 + $0x18] sm:$0xf]
    %v24 = vld [vmem:[%s1 + $0x1c] sm:$0xf]
    %v25 = vld [vmem:[%s1 + $0x20] sm:$0xf]
    %v26 = vld [vmem:[%s1 + $0x24] sm:$0xf]
    %v27 = vld [vmem:[%s1 + $0x28] sm:$0xf]
    %v28 = vld [vmem:[%s1 + $0x2c] sm:$0xf]
    %v29 = vld [vmem:[%s1 + $0x30] sm:$0xf]
    %v30 = vld [vmem:[%s1 + $0x34] sm:$0xf]
    %v31 = vld [vmem:[%s1 + $0x38] sm:$0xf]
    %v32 = vld [vmem:[%s1 + $0x3c] sm:$0xf]
    %v33 = vld [vmem:[%s1 + $0x40] sm:$0xf]
    %v34 = vld [vmem:[%s1 + $0x44] sm:$0xf]
    %v35 = vld [vmem:[%s1 + $0x48] sm:$0xf]
    %v36 = vld [vmem:[%s1 + $0x4c] sm:$0xf]
    %v37 = vld [vmem:[%s1 + $0x50] sm:$0xf]
    %v38 = vld [vmem:[%s1 + $0x54] sm:$0xf]
    %v39 = vld [vmem:[%s1 + $0x58] sm:$0xf]
    %v40 = vld [vmem:[%s1 + $0x5c] sm:$0xf]
    %v41 = vld [vmem:[%s1 + $0x60] sm:$0xf]
    %v42 = vld [vmem:[%s1 + $0x64] sm:$0xf]
    %v43 = vld [vmem:[%s1 + $0x68] sm:$0xf]
    %v44 = vld [vmem:[%s1 + $0x6c] sm:$0xf]
    %v45 = vld [vmem:[%s1 + $0x70] sm:$0xf]
    %v46 = vld [vmem:[%s1 + $0x74] sm:$0xf]
    %v47 = vld [vmem:[%s1 + $0x78] sm:$0xf]
    %v48 = vld [vmem:[%s1 + $0x7c] sm:$0xf]
    %v81 = vunpack.c.l.b16 %v17
    %v82 = vunpack.c.l.b16 %v18
    %v83 = vunpack.c.l.b16 %v19
    %v84 = vunpack.c.l.b16 %v20
    %v85 = vunpack.c.l.b16 %v21
    %v86 = vunpack.c.l.b16 %v22
    %v87 = vunpack.c.l.b16 %v23
    %v88 = vunpack.c.l.b16 %v24
    %v89 = vunpack.c.l.b16 %v25
    %v90 = vunpack.c.l.b16 %v26
    %v91 = vunpack.c.l.b16 %v27
    %v92 = vunpack.c.l.b16 %v28
    %v93 = vunpack.c.l.b16 %v29
    %v94 = vunpack.c.l.b16 %v30
    %v95 = vunpack.c.l.b16 %v31
    %v96 = vunpack.c.l.b16 %v32
    %v97 = vunpack.c.l.b16 %v33
    %v98 = vunpack.c.l.b16 %v34
    %v99 = vunpack.c.l.b16 %v35
    %v100 = vunpack.c.l.b16 %v36
    %v101 = vunpack.c.l.b16 %v37
    %v102 = vunpack.c.l.b16 %v38
    %v103 = vunpack.c.l.b16 %v39
    %v104 = vunpack.c.l.b16 %v40
    %v105 = vunpack.c.l.b16 %v41
    %v106 = vunpack.c.l.b16 %v42
    %v107 = vunpack.c.l.b16 %v43
    %v108 = vunpack.c.l.b16 %v44
    %v109 = vunpack.c.l.b16 %v45
    %v110 = vunpack.c.l.b16 %v46
    %v111 = vunpack.c.l.b16 %v47
    %v112 = vunpack.c.l.b16 %v48
    %v113 = vpack.c.b16 %v82, %v81
    %v114 = vpack.c.b16 %v84, %v83
    %v115 = vpack.c.b16 %v86, %v85
    %v116 = vpack.c.b16 %v88, %v87
    %v117 = vpack.c.b16 %v90, %v89
    %v118 = vpack.c.b16 %v92, %v91
    %v119 = vpack.c.b16 %v94, %v93
    %v120 = vpack.c.b16 %v96, %v95
    %v121 = vpack.c.b16 %v98, %v97
    %v122 = vpack.c.b16 %v100, %v99
    %v123 = vpack.c.b16 %v102, %v101
    %v124 = vpack.c.b16 %v104, %v103
    %v125 = vpack.c.b16 %v106, %v105
    %v126 = vpack.c.b16 %v108, %v107
    %v127 = vpack.c.b16 %v110, %v109
    %v128 = vpack.c.b16 %v112, %v111
    %145 = vmatprep.subr.bf16.mxu0 0
    %146 = vmatpush1.bf16.msra.mxu0 %v113
    %147 = vmatprep.subr.bf16.mxu0 0
    %148 = vmatpush1.bf16.msra.mxu0 %v114
    %149 = vmatprep.subr.bf16.mxu0 0
    %150 = vmatpush1.bf16.msra.mxu0 %v115
    %151 = vmatprep.subr.bf16.mxu0 0
    %152 = vmatpush1.bf16.msra.mxu0 %v116
    %153 = vmatprep.subr.bf16.mxu0 0
    %154 = vmatpush1.bf16.msra.mxu0 %v117
    %155 = vmatprep.subr.bf16.mxu0 0
    %156 = vmatpush1.bf16.msra.mxu0 %v118
    %157 = vmatprep.subr.bf16.mxu0 0
    %158 = vmatpush1.bf16.msra.mxu0 %v119
    %159 = vmatprep.subr.bf16.mxu0 0
    %160 = vmatpush1.bf16.msra.mxu0 %v120
    %161 = vmatprep.subr.bf16.mxu0 0
    %162 = vmatpush1.bf16.msra.mxu0 %v121
    %163 = vmatprep.subr.bf16.mxu0 0
    %164 = vmatpush1.bf16.msra.mxu0 %v122
    %165 = vmatprep.subr.bf16.mxu0 0
    %166 = vmatpush1.bf16.msra.mxu0 %v123
    %167 = vmatprep.subr.bf16.mxu0 0
    %168 = vmatpush1.bf16.msra.mxu0 %v124
    %169 = vmatprep.subr.bf16.mxu0 0
    %170 = vmatpush1.bf16.msra.mxu0 %v125
    %171 = vmatprep.subr.bf16.mxu0 0
    %172 = vmatpush1.bf16.msra.mxu0 %v126
    %173 = vmatprep.subr.bf16.mxu0 0
    %174 = vmatpush1.bf16.msra.mxu0 %v127
    %175 = vmatprep.subr.bf16.mxu0 0
    %176 = vmatpush1.bf16.msra.mxu0 %v128
    %177 = vmatprep.mubr.bf16.mxu0 %v16
    %178 = vmatmul.mubr.bf16.gmra.mrb[0].mxu0 %v15
    %v179 = vpop.f32.mrb[0].mxu0
    %v180 = vadd.f32 0.0, %v179
    %v181 = vpop.f32.mrb[0].mxu0
    %v182 = vpop.f32.mrb[0].mxu0
    %v183 = vpop.f32.mrb[0].mxu0
    %184 = vdwg.mxu0
    %vm185 = vcmask 261120
    %186 = vst.msk [vmem:[#allocation2] sm:$0xff] %vm185, %v180
    // Predicated region
    $region10: #{tpu_custom_call.1} parent=1 // pred_check
      _
    $region11: #{tpu_custom_call.1} parent=1 // pred_check_branch
      %188 = sbr.rel (0) target = $region13
    $region12: #{tpu_custom_call.1} parent=1 // pred_region
      %s190 = ssub.s32 128, 128
      %191 = vsyncadd [#allocation3], %s190
      %s193 = sshll.u32 [#allocation2], 4
      %s194 = int_to_ptr.vmem [resolvable:$true] %s193
      %196 = dma.vmem_to_hbm [thread:$0]  %s194, 128, %s2, [#allocation3]
    $region13: #{tpu_custom_call.1} parent=1 // pred_fallthru
      _
    // Predicated region
    $region14: #{tpu_custom_call.1} parent=1 // pred_check
      _
    $region15: #{tpu_custom_call.1} parent=1 // pred_check_branch
      %198 = sbr.rel (0) target = $region17
    $region16: #{tpu_custom_call.1} parent=1 // pred_region
      %199 = dma.done [#allocation3], 128
    $region17: #{tpu_custom_call.1} parent=1 // pred_fallthru
      _
    %200 = vsyncpa [#allocation3], 1

</llo_original>
